<compile_context>
chip_gen: v6e
topology: v6e:2x2x1
jax: 0.10.0
libtpu: 0.0.40
codegen_flags: <defaults>
</compile_context>

<pallas_src>
import functools

import jax
import jax.numpy as jnp
from jax.experimental import pallas as pl
from jax.experimental.pallas import tpu as pltpu


# --------------------------------------------------------------------------
# helpers
# --------------------------------------------------------------------------

def _round_up(v, m):
    return -(-v // m) * m


def _vmem_budgets():
    """(tile_budget_bytes, vmem_limit_bytes) derived from this chip's VMEM."""
    vmem = None
    try:
        vmem = getattr(pltpu.get_tpu_info(), "vmem_capacity_bytes", None)
    except Exception:
        vmem = None
    if not vmem or vmem <= 0:
        vmem = 64 * 1024 * 1024          # conservative: v7x per-TensorCore VMEM
    vmem = int(vmem)
    limit = vmem * 3 // 4                # leave headroom for compiler scratch
    budget = vmem * 3 // 8               # what the tile picker may spend
    return budget, limit


def _pick_c_tile(B, C, HWp, x_itemsize, budget_bytes, sub):
    """Pick (channel_tile, padded_C) for the single-pass path.

    Returns (None, None) when even one sublane group of channels with the full
    (padded) spatial extent does not fit the VMEM budget -> caller must use the
    HW-split (two-kernel) path.
    """
    # Per channel row: 2x input + 2x output pipeline buffers in x's dtype plus
    # ~3 full-size f32 temporaries live inside the body (upcast copy, centered
    # diff, and the f32 output expression before the final cast).
    per_row = B * HWp * (4 * x_itemsize + 3 * 4)
    cap = int(budget_bytes // max(per_row, 1))
    if cap < min(C, sub):
        return None, None
    if C <= sub:
        return C, C                      # single tiny tile (full-dim block is legal)

    cap = max(sub, (min(cap, C) // sub) * sub)
    blk_bytes = lambda rows: B * HWp * x_itemsize * rows

    candidates = []
    tc = cap
    while tc >= sub:
        candidates.append((tc, _round_up(C, tc)))
        tc -= sub

    def score(cand):
        tcand, Cp = cand
        n = Cp // tcand
        return (
            n >= 2,                       # double-buffered pipeline actually engages
            -(Cp - C),                    # least channel padding (extra HBM traffic)
            n % 2 == 0,                   # balances the two TensorCores on v7x
            blk_bytes(tcand) >= (2 << 20),  # >= ~2 MiB blocks amortize step cost
            n >= 4,                       # >= 2 tiles per TensorCore
            tcand,                        # then the biggest tile
        )

    return max(candidates, key=score)


# --------------------------------------------------------------------------
# kernels
# --------------------------------------------------------------------------

def _ccbn_kernel(x_ref, gb_ref, o_ref, *, eps, inv_n, hw_valid):
    """Single-pass path: exact per-channel stats inside one channel tile."""
    xf = x_ref[...].astype(jnp.float32)                     # (B, tc, HWp)
    # Zero padding in the lane (HW) dim does not perturb the sum.
    m = jnp.sum(xf, axis=(0, 2), keepdims=True) * inv_n     # (1, tc, 1)
    d = xf - m
    if hw_valid != xf.shape[2]:
        lane = jax.lax.broadcasted_iota(jnp.int32, (1, 1, xf.shape[2]), 2)
        d = jnp.where(lane < hw_valid, d, 0.0)               # exact two-pass var
    var = jnp.sum(d * d, axis=(0, 2), keepdims=True) * inv_n  # biased variance
    inv_std = jax.lax.rsqrt(var + eps)                        # EUP slot (free-ish)

    gb = gb_ref[...].astype(jnp.float32)                      # (B, tc, 2)
    scale = inv_std * gb[:, :, 0:1]                           # gain folded in
    shift = gb[:, :, 1:2] - m * scale                         # bias - m*scale
    # single fused streaming write: 1 mul + 1 add per element
    o_ref[...] = (xf * scale + shift).astype(o_ref.dtype)


def _ccbn_stats_kernel(x_ref, s_ref):
    """Split path pass 1: accumulate per-channel sum / sum-of-squares."""
    @pl.when(pl.program_id(1) == 0)
    def _():
        s_ref[...] = jnp.zeros_like(s_ref)
    xf = x_ref[...].astype(jnp.float32)                       # (B, tc, thw)
    s = jnp.sum(xf, axis=(0, 2), keepdims=True)[0]            # (tc, 1)
    ss = jnp.sum(xf * xf, axis=(0, 2), keepdims=True)[0]      # (tc, 1)
    s_ref[...] += jnp.concatenate([s, ss], axis=1)            # (tc, 2)


def _ccbn_apply_kernel(x_ref, sc_ref, o_ref):
    """Split path pass 2: pure streaming normalize with precomputed scale/shift."""
    xf = x_ref[...].astype(jnp.float32)                       # (B, tc, thw)
    sc = sc_ref[...].astype(jnp.float32)                      # (B, tc, 2)
    o_ref[...] = (xf * sc[:, :, 0:1] + sc[:, :, 1:2]).astype(o_ref.dtype)


# --------------------------------------------------------------------------
# dispatch paths
# --------------------------------------------------------------------------

def _ccbn_single_pass(x3, gb2, tc, Cp, HWp, eps, limit):
    B, C, HW = x3.shape
    dtype = x3.dtype
    if Cp != C or HWp != HW:
        x3 = jnp.pad(x3, ((0, 0), (0, Cp - C), (0, HWp - HW)))
    if Cp != C:
        gb2 = jnp.pad(gb2, ((0, 0), (0, Cp - C), (0, 0)))

    n_steps = Cp // tc
    blk_bytes = B * tc * HWp * jnp.dtype(dtype).itemsize
    pipe = {}
    if n_steps >= 3 and blk_bytes < (1 << 20):
        # small blocks on a long grid: 3-deep buffering hides DMA issue latency
        pipe = dict(pipeline_mode=pl.Buffered(3))

    kernel = functools.partial(_ccbn_kernel, eps=float(eps),
                               inv_n=1.0 / float(B * HW), hw_valid=HW)
    out3 = pl.pallas_call(
        kernel,
        out_shape=jax.ShapeDtypeStruct((B, Cp, HWp), dtype),
        grid=(n_steps,),
        in_specs=[
            pl.BlockSpec((B, tc, HWp), lambda c: (0, c, 0), **pipe),
            pl.BlockSpec((B, tc, 2), lambda c: (0, c, 0)),
        ],
        out_specs=pl.BlockSpec((B, tc, HWp), lambda c: (0, c, 0), **pipe),
        compiler_params=pltpu.CompilerParams(
            dimension_semantics=("parallel",),      # channel tiles are independent
            vmem_limit_bytes=int(limit),
        ),
    )(x3, gb2)
    return out3[:, :C, :HW]


def _ccbn_split(x3, gb2, HWp, eps, budget, limit, sub):
    """Large feature maps: per-channel stats accumulated over HW tiles, then a
    streaming apply pass (one extra read of x, guaranteed VMEM fit)."""
    B, C, HW = x3.shape
    dtype = x3.dtype
    itemsize = jnp.dtype(dtype).itemsize
    Cp = _round_up(C, sub)
    per_elem = 4 * itemsize + 3 * 4

    tc = sub
    thw_cap = int(budget // max(B * tc * per_elem, 1))
    thw = min(HWp, max(128, (thw_cap // 128) * 128))
    while HWp % thw:
        thw -= 128
    while (tc * 2 <= Cp and Cp % (tc * 2) == 0
           and B * (tc * 2) * thw * per_elem <= budget):
        tc *= 2
    nc, nh = Cp // tc, HWp // thw

    if Cp != C or HWp != HW:
        x3p = jnp.pad(x3, ((0, 0), (0, Cp - C), (0, HWp - HW)))
    else:
        x3p = x3

    # pass 1: per-channel sum / sum-of-squares (accumulator over the HW axis)
    stats = pl.pallas_call(
        _ccbn_stats_kernel,
        out_shape=jax.ShapeDtypeStruct((Cp, 2), jnp.float32),
        grid=(nc, nh),
        in_specs=[pl.BlockSpec((B, tc, thw), lambda c, h: (0, c, h))],
        out_specs=pl.BlockSpec((tc, 2), lambda c, h: (c, 0)),
        compiler_params=pltpu.CompilerParams(
            dimension_semantics=("parallel", "arbitrary"),
            vmem_limit_bytes=int(limit),
        ),
    )(x3p)

    n = float(B * HW)
    m = stats[:C, 0] / n
    var = jnp.maximum(stats[:C, 1] / n - m * m, 0.0)           # biased, clamped
    inv_std = jax.lax.rsqrt(var + eps)                          # (C,)
    scale = inv_std[None, :] * gb2[:, :, 0]                     # (B, C)
    shift = gb2[:, :, 1] - m[None, :] * scale                   # (B, C)
    sc2 = jnp.stack([scale, shift], axis=-1)                    # (B, C, 2)
    if Cp != C:
        sc2 = jnp.pad(sc2, ((0, 0), (0, Cp - C), (0, 0)))

    # pass 2: pure streaming normalize (1 mul + 1 add per element)
    out3 = pl.pallas_call(
        _ccbn_apply_kernel,
        out_shape=jax.ShapeDtypeStruct((B, Cp, HWp), dtype),
        grid=(nc, nh),
        in_specs=[
            pl.BlockSpec((B, tc, thw), lambda c, h: (0, c, h)),
            pl.BlockSpec((B, tc, 2), lambda c, h: (0, c, 0)),
        ],
        out_specs=pl.BlockSpec((B, tc, thw), lambda c, h: (0, c, h)),
        compiler_params=pltpu.CompilerParams(
            dimension_semantics=("parallel", "parallel"),
            vmem_limit_bytes=int(limit),
        ),
    )(x3p, sc2)
    return out3[:, :C, :HW]


# --------------------------------------------------------------------------
# public wrapper
# --------------------------------------------------------------------------

def ccbn_forward(x, y, wg, bg, wb, bb, *, eps=1e-5,
                 vmem_tile_budget=None, vmem_limit_bytes=None):
    """Class-conditional BN forward (training-mode 'bn' branch).

    x: (B, C, H, W), y: (B, input_size); wg/bg and wb/bb are the gain/bias
    Linear layers' (input_size, C) weights and (C,) biases.
    """
    B, C, H, W = x.shape
    HW = H * W

    budget, limit = _vmem_budgets()
    if vmem_tile_budget is not None:
        budget = int(vmem_tile_budget)
    if vmem_limit_bytes is not None:
        limit = int(vmem_limit_bytes)

    itemsize = jnp.dtype(x.dtype).itemsize
    sub = max(8, 32 // itemsize)          # sublane multiple: 8 f32 / 16 bf16 / 32 int8
    HWp = _round_up(HW, 128)              # lane-dense last dim -> unmasked stores

    # Tiny class-conditional linears: one fused (B,in)@(in,2C) matmul hoisted
    # out of the streaming kernel (far below MXU-worthy shapes; review-endorsed).
    w_fused = jnp.concatenate([wg, wb], axis=1).astype(jnp.float32)   # (In, 2C)
    b_fused = jnp.concatenate([bg, bb], axis=0).astype(jnp.float32)   # (2C,)
    gb = jnp.dot(y.astype(jnp.float32), w_fused) + b_fused            # (B, 2C)
    gb2 = jnp.stack([1.0 + gb[:, :C], gb[:, C:]], axis=-1)            # (B, C, 2)

    x3 = x.reshape(B, C, HW)
    tc, Cp = _pick_c_tile(B, C, HWp, itemsize, budget, sub)
    if tc is not None:
        out3 = _ccbn_single_pass(x3, gb2, tc, Cp, HWp, eps, limit)
    else:
        # Feature map too large for a full (B, sub, HW) block in VMEM.
        out3 = _ccbn_split(x3, gb2, HWp, eps, budget, limit, sub)
    return out3.reshape(B, C, H, W)


def _reference(x, y, wg, bg, wb, bb, eps=1e-5):
    # pure-JAX reference of the same math (training-mode batch norm)
    gain = (1.0 + y @ wg + bg)[:, :, None, None]
    bias = (y @ wb + bb)[:, :, None, None]
    xf = x.astype(jnp.float32)
    m = jnp.mean(xf, axis=(0, 2, 3), keepdims=True)
    var = jnp.mean((xf - m) ** 2, axis=(0, 2, 3), keepdims=True)
    out = (xf - m) * jax.lax.rsqrt(var + eps)
    return out * gain + bias


if __name__ == "__main__":
    B, C, H, W = 2, 16, 16, 16          # output_size (channels) = 16
    IN = 32                              # input_size for the linear layers

    key = jax.random.PRNGKey(0)
    kx, ky, kwg, kbg, kwb, kbb = jax.random.split(key, 6)

    x = jax.random.normal(kx, (B, C, H, W), dtype=jnp.float32)
    y = jax.random.normal(ky, (B, IN), dtype=jnp.float32)

    # nn.Linear-style deterministic init: U(-1/sqrt(in), 1/sqrt(in))
    bound = 1.0 / jnp.sqrt(IN)
    wg = jax.random.uniform(kwg, (IN, C), minval=-bound, maxval=bound, dtype=jnp.float32)
    bg = jax.random.uniform(kbg, (C,), minval=-bound, maxval=bound, dtype=jnp.float32)
    wb = jax.random.uniform(kwb, (IN, C), minval=-bound, maxval=bound, dtype=jnp.float32)
    bb = jax.random.uniform(kbb, (C,), minval=-bound, maxval=bound, dtype=jnp.float32)

    ref = _reference(x, y, wg, bg, wb, bb)

    # 1) main single-pass path (channel-tiled streaming kernel)
    out = jax.block_until_ready(ccbn_forward(x, y, wg, bg, wb, bb))
    assert out.shape == (B, C, H, W)
    assert jnp.allclose(out, ref, atol=1e-4, rtol=1e-4), \
        float(jnp.max(jnp.abs(out - ref)))

    # 2) force the HW-split fallback path (stats kernel + apply kernel)
    out2 = jax.block_until_ready(
        ccbn_forward(x, y, wg, bg, wb, bb, vmem_tile_budget=64 * 1024))
    assert jnp.allclose(out2, ref, atol=1e-4, rtol=1e-4), \
        float(jnp.max(jnp.abs(out2 - ref)))

    # 3) non-multiple-of-128 spatial extent exercises the lane-padding/mask path
    x_odd = jax.random.normal(kx, (B, C, 12, 10), dtype=jnp.float32)
    ref_odd = _reference(x_odd, y, wg, bg, wb, bb)
    out3 = jax.block_until_ready(ccbn_forward(x_odd, y, wg, bg, wb, bb))
    assert jnp.allclose(out3, ref_odd, atol=1e-4, rtol=1e-4), \
        float(jnp.max(jnp.abs(out3 - ref_odd)))

    # TODO(synk): running-stat buffer updates (stored_mean/stored_var momentum
    # update) are a training side-effect not part of the returned tensor; omitted.
    print("KERNEL_OK")
</pallas_src>

<mosaic_0001>
module attributes {stable_mosaic.version = 11 : i64} {
  func.func @_ccbn_kernel(%arg0: i32, %arg1: memref<2x8x256xf32, #tpu.memory_space<vmem>>, %arg2: memref<2x8x2xf32, #tpu.memory_space<vmem>>, %arg3: memref<2x8x256xf32, #tpu.memory_space<vmem>>) attributes {dimension_semantics = [#tpu.dimension_semantics<parallel>], iteration_bounds = array<i64: 2>, scalar_prefetch = 0 : i64, scratch_operands = 0 : i64, tpu.core_type = #tpu.core_type<tc>, window_params = [{transform_indices = @transform_0, window_bounds = array<i64: 2, 8, 256>}, {transform_indices = @transform_1, window_bounds = array<i64: 2, 8, 2>}, {transform_indices = @transform_2, window_bounds = array<i64: 2, 8, 256>}]} {
    %c0 = arith.constant 0 : index
    %c0_0 = arith.constant 0 : index
    %c0_1 = arith.constant 0 : index
    %0 = vector.load %arg1[%c0, %c0_0, %c0_1] : memref<2x8x256xf32, #tpu.memory_space<vmem>>, vector<2x8x256xf32>
    %cst = arith.constant dense<0.000000e+00> : vector<8xf32>
    %1 = vector.multi_reduction <add>, %0, %cst [0, 2] : vector<2x8x256xf32> to vector<8xf32>
    %2 = vector.shape_cast %1 : vector<8xf32> to vector<1x8x1xf32>
    %cst_2 = arith.constant 0.001953125 : f32
    %3 = vector.broadcast %cst_2 : f32 to vector<1x8x1xf32>
    %4 = arith.mulf %2, %3 : vector<1x8x1xf32>
    %5 = vector.broadcast %4 : vector<1x8x1xf32> to vector<2x8x256xf32>
    %6 = arith.subf %0, %5 : vector<2x8x256xf32>
    %7 = arith.mulf %6, %6 : vector<2x8x256xf32>
    %cst_3 = arith.constant dense<0.000000e+00> : vector<8xf32>
    %8 = vector.multi_reduction <add>, %7, %cst_3 [0, 2] : vector<2x8x256xf32> to vector<8xf32>
    %9 = vector.shape_cast %8 : vector<8xf32> to vector<1x8x1xf32>
    %cst_4 = arith.constant 0.001953125 : f32
    %10 = vector.broadcast %cst_4 : f32 to vector<1x8x1xf32>
    %11 = arith.mulf %9, %10 : vector<1x8x1xf32>
    %cst_5 = arith.constant 9.99999974E-6 : f32
    %12 = vector.broadcast %cst_5 : f32 to vector<1x8x1xf32>
    %13 = arith.addf %11, %12 : vector<1x8x1xf32>
    %14 = math.rsqrt %13 : vector<1x8x1xf32>
    %c0_6 = arith.constant 0 : index
    %c0_7 = arith.constant 0 : index
    %c0_8 = arith.constant 0 : index
    %15 = vector.load %arg2[%c0_6, %c0_7, %c0_8] : memref<2x8x2xf32, #tpu.memory_space<vmem>>, vector<2x8x2xf32>
    %16 = vector.extract_strided_slice %15 {offsets = [0, 0, 0], sizes = [2, 8, 1], strides = [1, 1, 1]} : vector<2x8x2xf32> to vector<2x8x1xf32>
    %17 = vector.broadcast %14 : vector<1x8x1xf32> to vector<2x8x1xf32>
    %18 = arith.mulf %17, %16 : vector<2x8x1xf32>
    %19 = vector.extract_strided_slice %15 {offsets = [0, 0, 1], sizes = [2, 8, 1], strides = [1, 1, 1]} : vector<2x8x2xf32> to vector<2x8x1xf32>
    %20 = vector.broadcast %4 : vector<1x8x1xf32> to vector<2x8x1xf32>
    %21 = arith.mulf %20, %18 : vector<2x8x1xf32>
    %22 = arith.subf %19, %21 : vector<2x8x1xf32>
    %23 = vector.broadcast %18 : vector<2x8x1xf32> to vector<2x8x256xf32>
    %24 = arith.mulf %0, %23 : vector<2x8x256xf32>
    %25 = vector.broadcast %22 : vector<2x8x1xf32> to vector<2x8x256xf32>
    %26 = arith.addf %24, %25 : vector<2x8x256xf32>
    %c0_9 = arith.constant 0 : index
    %c0_10 = arith.constant 0 : index
    %c0_11 = arith.constant 0 : index
    %27 = vector.load %arg3[%c0_9, %c0_10, %c0_11] : memref<2x8x256xf32, #tpu.memory_space<vmem>>, vector<2x8x256xf32>
    tpu.vector_store %arg3[%c0_9, %c0_10, %c0_11], %26 {strides = array<i32>} : memref<2x8x256xf32, #tpu.memory_space<vmem>>, vector<2x8x256xf32>,
    return
  }
  func.func @transform_0(%arg0: i32) -> (i32, i32, i32) {
    %c0_i32 = arith.constant 0 : i32
    %c0_i32_0 = arith.constant 0 : i32
    %c0_i32_1 = arith.constant 0 : i32
    return %c0_i32, %arg0, %c0_i32_0 : i32, i32, i32
  }
  func.func @transform_1(%arg0: i32) -> (i32, i32, i32) {
    %c0_i32 = arith.constant 0 : i32
    %c0_i32_0 = arith.constant 0 : i32
    %c0_i32_1 = arith.constant 0 : i32
    return %c0_i32, %arg0, %c0_i32_0 : i32, i32, i32
  }
  func.func @transform_2(%arg0: i32) -> (i32, i32, i32) {
    %c0_i32 = arith.constant 0 : i32
    %c0_i32_0 = arith.constant 0 : i32
    %c0_i32_1 = arith.constant 0 : i32
    return %c0_i32, %arg0, %c0_i32_0 : i32, i32, i32
  }
}

</mosaic_0001>

<llo_original>
// kernel: tpu_custom_call.1
$region0: #{tpu_custom_call.1}
  #allocation0 [shape = 'u32[]', space=smem, size = 0x4, offset = 0x4, fixed_abs, tag = 'smem constant byte address 0x4 - core index']
  #allocation1 [shape = 'u32[144,128]{1,0:T(1,128)}', space=vmem, size = 0x12000, scoped, tag = 'internal scratch']
  %s0 = inlined_call_operand.hbm [shape: f32[2,16,256], index: 0, kind: input, shape index: {}]
  %s1 = inlined_call_operand.vmem [shape: f32[2,16,2], index: 1, kind: input, shape index: {}]
  %s2 = inlined_call_operand.hbm [shape: f32[2,16,256], index: 2, kind: output, shape index: {}]
  %s3 = sld [smem:[#allocation0]]
  $region83: #{tpu_custom_call.1} parent=0
    _
  %s5 = ssub.s32 1, %s3
  %s6 = scalar_select 0, %s5, %s3
  $region1: #{tpu_custom_call.1} parent=0
    #allocation2 [shape = 'u8[32768]{0}', space=vmem, size = 0x8000, scoped, tag = 'input window, operand 0']
    #allocation3 [shape = 's32[2]{0}', space=sflag, size = 0x8, scoped, tag = 'scoped memory for tpu_custom_call.1']
    #allocation4 [shape = 's32[2]{0}', space=sflag, size = 0x8, scoped, tag = 'scoped memory for tpu_custom_call.1']
    #allocation5 [shape = 'u8[16384]{0}', space=vmem, size = 0x4000, scoped, tag = 'input window, operand 1']
    #allocation6 [shape = 'u8[32768]{0}', space=vmem, size = 0x8000, scoped, tag = 'output window, operand 0']
    %7 = vsyncpa [#allocation3], 0
    %s8 = scalar_lea.sflag [#allocation3], 1
    %9 = vsyncpa %s8, 0
    %10 = vsyncpa [#allocation4], 0
    %s11 = scalar_lea.sflag [#allocation4], 1
    %12 = vsyncpa %s11, 0
    loop: start=0, step=1, limit=4
    $region2: #{tpu_custom_call.1} parent=1 // loop_pre_header
      _
    $region3: #{tpu_custom_call.1} parent=1 // loop_header
      %s14 = sphi 0, %s18
      %p15 = scmp.ge.s32.totalorder %s14, 4
      %s24 = sphi 0, %s26
      %s27 = sphi 0, %s24
      %s28 = sphi 0, %s27
      %s44 = sphi 0, %s28
      %s50 = sphi 0, %s52
      %s53 = sphi 0, %s50
      %s54 = sphi 0, %s53
      %s70 = sphi 0, %s54
      %s76 = sphi 0, %s78
      %s79 = sphi 0, %s76
      %s80 = sphi 0, %s79
      %s96 = sphi 0, %s80
    $region4: #{tpu_custom_call.1} parent=1 // loop_header_branch
      %17 = sbr.rel (%p15) target = $region8
    $region5: #{tpu_custom_call.1} parent=1 // loop_body
      %s19 = ssub.s32 %s14, 1
      %s20 = ssub.s32 %s14, 2
      %s21 = sadd.s32 %s14, 1
      %s22 = ssub.s32 %s14, %s21
      %p23 = scmp.eq.s32.totalorder %s22, 0
      %s25 = sadd.s32 %s24, 1
      %s26 = scalar_select %p23, %s24, %s25
      %p29 = pneg %p23
      %p30 = scmp.eq.s32.totalorder %s14, 1
      %p31 = por %p29, %p30
      %p32 = scmp.ne.s32.totalorder %s24, %s27
      %p33 = scmp.eq.s32.totalorder %s14, 0
      %p34 = por %p32, %p33
      %p35 = scmp.ne.s32.totalorder %s24, %s27
      %p36 = scmp.eq.s32.totalorder %s19, 1
      %p37 = por %p35, %p36
      %p38 = scmp.ne.s32.totalorder %s27, %s28
      %p39 = scmp.eq.s32.totalorder %s19, 0
      %p40 = por %p38, %p39
      %p41 = scmp.ne.s32.totalorder %s27, %s28
      %p42 = scmp.eq.s32.totalorder %s20, 1
      %p43 = por %p41, %p42
      %p45 = scmp.ne.s32.totalorder %s28, %s44
      %p46 = scmp.eq.s32.totalorder %s20, 0
      %p47 = por %p45, %p46
      %s48 = ssub.s32 %s14, %s21
      %p49 = scmp.eq.s32.totalorder %s48, 0
      %s51 = sadd.s32 %s50, 1
      %s52 = scalar_select %p49, %s50, %s51
      %p55 = pneg %p49
      %p56 = scmp.eq.s32.totalorder %s14, 1
      %p57 = por %p55, %p56
      %p58 = scmp.ne.s32.totalorder %s50, %s53
      %p59 = scmp.eq.s32.totalorder %s14, 0
      %p60 = por %p58, %p59
      %p61 = scmp.ne.s32.totalorder %s50, %s53
      %p62 = scmp.eq.s32.totalorder %s19, 1
      %p63 = por %p61, %p62
      %p64 = scmp.ne.s32.totalorder %s53, %s54
      %p65 = scmp.eq.s32.totalorder %s19, 0
      %p66 = por %p64, %p65
      %p67 = scmp.ne.s32.totalorder %s53, %s54
      %p68 = scmp.eq.s32.totalorder %s20, 1
      %p69 = por %p67, %p68
      %p71 = scmp.ne.s32.totalorder %s54, %s70
      %p72 = scmp.eq.s32.totalorder %s20, 0
      %p73 = por %p71, %p72
      %s74 = ssub.s32 %s14, %s21
      %p75 = scmp.eq.s32.totalorder %s74, 0
      %s77 = sadd.s32 %s76, 1
      %s78 = scalar_select %p75, %s76, %s77
      %p81 = pneg %p75
      %p82 = scmp.eq.s32.totalorder %s14, 1
      %p83 = por %p81, %p82
      %p84 = scmp.ne.s32.totalorder %s76, %s79
      %p85 = scmp.eq.s32.totalorder %s14, 0
      %p86 = por %p84, %p85
      %p87 = scmp.ne.s32.totalorder %s76, %s79
      %p88 = scmp.eq.s32.totalorder %s19, 1
      %p89 = por %p87, %p88
      %p90 = scmp.ne.s32.totalorder %s79, %s80
      %p91 = scmp.eq.s32.totalorder %s19, 0
      %p92 = por %p90, %p91
      %p93 = scmp.ne.s32.totalorder %s79, %s80
      %p94 = scmp.eq.s32.totalorder %s20, 1
      %p95 = por %p93, %p94
      %p97 = scmp.ne.s32.totalorder %s80, %s96
      %p98 = scmp.eq.s32.totalorder %s20, 0
      %p99 = por %p97, %p98
      %p100 = scmp.le.s32.totalorder 1, %s14
      %p101 = scmp.lt.s32.totalorder %s14, 3
      %p102 = pnand %p100, %p101
      %p103 = pneg %p102
      // Predicated region
      $region9: #{tpu_custom_call.1} parent=5 // pred_check
        _
      $region10: #{tpu_custom_call.1} parent=5 // pred_check_branch
        %105 = sbr.rel (%p102) target = $region12
      $region11: #{tpu_custom_call.1} parent=5 // pred_region
        %s106 = ssub.s32 %s14, 1
      $region12: #{tpu_custom_call.1} parent=5 // pred_fallthru
        _
      %p107 = scmp.lt.s32.totalorder %s14, 2
      // Predicated region
      $region13: #{tpu_custom_call.1} parent=5 // pred_check
        %p108 = pneg %p107
      $region14: #{tpu_custom_call.1} parent=5 // pred_check_branch
        %110 = sbr.rel (%p108) target = $region16
      $region15: #{tpu_custom_call.1} parent=5 // pred_region
        // Predicated region
        $region17: #{tpu_custom_call.1} parent=15 // pred_check
          %p111 = pneg %p34
        $region18: #{tpu_custom_call.1} parent=15 // pred_check_branch
          %113 = sbr.rel (%p111) target = $region20
        $region19: #{tpu_custom_call.1} parent=15 // pred_region
          %s114 = sand.u32 %s24, 1
          %s115 = scalar_lea.sflag [#allocation3], %s114
          %s116 = sand.u32 %s24, 1
          %s117 = smul.addr %s116, 32
          %s118 = scalar_lea.vmem [#allocation2], %s117
          %s120 = ssub.s32 512, 512
          %121 = vsyncadd %s115, %s120
          %s122 = smul.addr %s14, 2
          %s123 = smul.addr %s122, 128
          %s124 = scalar_lea.hbm %s0, %s123
          %s125 = sshll.u32 %s118, 4
          %s126 = int_to_ptr.vmem [resolvable:$true] %s125
          %131 = dma.hbm_to_vmem [thread:$0]  %s124, 512, %s126, %s115, 512, 256, 16
        $region20: #{tpu_custom_call.1} parent=15 // pred_fallthru
          _
        // Predicated region
        $region21: #{tpu_custom_call.1} parent=15 // pred_check
          %p132 = pneg %p60
        $region22: #{tpu_custom_call.1} parent=15 // pred_check_branch
          %134 = sbr.rel (%p132) target = $region24
        $region23: #{tpu_custom_call.1} parent=15 // pred_region
          %s135 = sand.u32 %s50, 1
          %s136 = sand.u32 %s50, 1
          %s137 = smul.addr %s136, 16
          %s138 = scalar_lea.vmem [#allocation5], %s137
          %s139 = smul.addr %s14, 8
          %s140 = scalar_lea.vmem %s1, %s139
          // Predicated region
          $region25: #{tpu_custom_call.1} parent=23 // pred_check
            _
          $region26: #{tpu_custom_call.1} parent=23 // pred_check_branch
            %142 = sbr.rel (0) target = $region28
          $region27: #{tpu_custom_call.1} parent=23 // pred_region
            // Predicated region
            $region29: #{tpu_custom_call.1} parent=27 // pred_check
              _
            $region30: #{tpu_custom_call.1} parent=27 // pred_check_branch
              %144 = sbr.rel (0) target = $region32
            $region31: #{tpu_custom_call.1} parent=27 // pred_region
              // Predicated region
              $region44: #{tpu_custom_call.1} parent=31 // pred_check
                _
              $region45: #{tpu_custom_call.1} parent=31 // pred_check_branch
                %162 = sbr.rel (0) target = $region47
              $region46: #{tpu_custom_call.1} parent=31 // pred_region
                loop: start=0, step=1, limit=1
                $region48: #{tpu_custom_call.1} parent=46 // loop_pre_header
                  _
                $region49: #{tpu_custom_call.1} parent=46 // loop_header
                  %s164 = sphi 0, %s168
                  %p165 = scmp.ge.s32.totalorder %s164, 1
                  %s169 = sphi %s140, %s140
                  %s170 = sphi %s138, %s138
                $region50: #{tpu_custom_call.1} parent=46 // loop_header_branch
                  %167 = sbr.rel (%p165) target = $region54
                $region51: #{tpu_custom_call.1} parent=46 // loop_body
                  %v171 = vld [vmem:[%s169] sm:$0xff]
                  %172 = vst [vmem:[%s170] sm:$0xff] %v171
                  %v173 = vld [vmem:[%s169 + $0x10] sm:$0xff]
                  %174 = vst [vmem:[%s170 + $0x8] sm:$0xff] %v173
                $region52: #{tpu_custom_call.1} parent=46 // loop_footer
                  %s168 = sadd.s32 1, %s164
                $region53: #{tpu_custom_call.1} parent=46 // loop_footer_branch
                  %163 = sbr.rel target = $region49
                $region54: #{tpu_custom_call.1} parent=46 // loop_exit
                  _
              $region47: #{tpu_custom_call.1} parent=31 // pred_fallthru
                _
              // Predicated region
              $region55: #{tpu_custom_call.1} parent=31 // pred_check
                _
              $region56: #{tpu_custom_call.1} parent=31 // pred_check_branch
                %176 = sbr.rel target = $region58
              $region57: #{tpu_custom_call.1} parent=31 // pred_region
                _
              $region58: #{tpu_custom_call.1} parent=31 // pred_fallthru
                _
            $region32: #{tpu_custom_call.1} parent=27 // pred_fallthru
              _
            // Predicated region
            $region33: #{tpu_custom_call.1} parent=27 // pred_check
              _
            $region34: #{tpu_custom_call.1} parent=27 // pred_check_branch
              %146 = sbr.rel target = $region36
            $region35: #{tpu_custom_call.1} parent=27 // pred_region
              %s148 = ssub.s32 256, 1
              loop: start=0, step=1, limit=1
              $region37: #{tpu_custom_call.1} parent=35 // loop_pre_header
                _
              $region38: #{tpu_custom_call.1} parent=35 // loop_header
                %s150 = sphi 0, %s154
                %p151 = scmp.ge.s32.totalorder %s150, 1
                %s155 = sphi %s140, %s140
                %s156 = sphi %s138, %s138
              $region39: #{tpu_custom_call.1} parent=35 // loop_header_branch
                %153 = sbr.rel (%p151) target = $region43
              $region40: #{tpu_custom_call.1} parent=35 // loop_body
                %v157 = vld [vmem:[%s155] sm:%s148]
                %158 = vst [vmem:[%s156] sm:%s148] %v157
                %v159 = vld [vmem:[%s155 + $0x10] sm:%s148]
                %160 = vst [vmem:[%s156 + $0x8] sm:%s148] %v159
              $region41: #{tpu_custom_call.1} parent=35 // loop_footer
                %s154 = sadd.s32 1, %s150
              $region42: #{tpu_custom_call.1} parent=35 // loop_footer_branch
                %149 = sbr.rel target = $region38
              $region43: #{tpu_custom_call.1} parent=35 // loop_exit
                _
            $region36: #{tpu_custom_call.1} parent=27 // pred_fallthru
              _
          $region28: #{tpu_custom_call.1} parent=23 // pred_fallthru
            _
          %177 = vnop
        $region24: #{tpu_custom_call.1} parent=15 // pred_fallthru
          _
      $region16: #{tpu_custom_call.1} parent=5 // pred_fallthru
        _
      %p178 = scmp.le.s32.totalorder 1, %s14
      %p179 = scmp.lt.s32.totalorder %s14, 3
      %p180 = pnand %p178, %p179
      %p181 = pneg %p180
      // Predicated region
      $region59: #{tpu_custom_call.1} parent=5 // pred_check
        _
      $region60: #{tpu_custom_call.1} parent=5 // pred_check_branch
        %183 = sbr.rel (%p180) target = $region62
      $region61: #{tpu_custom_call.1} parent=5 // pred_region
        %s184 = ssub.s32 %s14, 1
        %s185 = sand.u32 %s27, 1
        %s186 = scalar_lea.sflag [#allocation3], %s185
        %s187 = sand.u32 %s27, 1
        %s188 = smul.addr %s187, 32
        %s189 = scalar_lea.vmem [#allocation2], %s188
        // Predicated region
        $region63: #{tpu_custom_call.1} parent=61 // pred_check
          %p190 = pneg %p40
        $region64: #{tpu_custom_call.1} parent=61 // pred_check_branch
          %192 = sbr.rel (%p190) target = $region66
        $region65: #{tpu_custom_call.1} parent=61 // pred_region
          %193 = dma.done %s186, 512
        $region66: #{tpu_custom_call.1} parent=61 // pred_fallthru
          _
        %s194 = sand.u32 %s53, 1
        %s195 = sand.u32 %s53, 1
        %s196 = smul.addr %s195, 16
        %s197 = scalar_lea.vmem [#allocation5], %s196
        // Predicated region
        $region67: #{tpu_custom_call.1} parent=61 // pred_check
          %p198 = pneg %p66
        $region68: #{tpu_custom_call.1} parent=61 // pred_check_branch
          %200 = sbr.rel (%p198) target = $region70
        $region69: #{tpu_custom_call.1} parent=61 // pred_region
          _
        $region70: #{tpu_custom_call.1} parent=61 // pred_fallthru
          _
        %s201 = sand.u32 %s27, 1
        %s202 = scalar_lea.sflag [#allocation3], %s201
        %s203 = sand.u32 %s27, 1
        %s204 = smul.addr %s203, 32
        %s205 = scalar_lea.vmem [#allocation2], %s204
        %p206 = pneg %p40
        %p207 = pneg %p37
        %s208 = sand.u32 %s53, 1
        %s209 = sand.u32 %s53, 1
        %s210 = smul.addr %s209, 16
        %s211 = scalar_lea.vmem [#allocation5], %s210
        %p212 = pneg %p66
        %p213 = pneg %p63
        %p214 = pneg %p92
        %p215 = pneg %p89
        %s216 = sand.u32 %s79, 1
        %s217 = scalar_lea.sflag [#allocation4], %s216
        %s218 = sand.u32 %s79, 1
        %s219 = smul.addr %s218, 32
        %s220 = scalar_lea.vmem [#allocation6], %s219
        %v221 = vld [vmem:[%s189] sm:$0xff]
        %v222 = vld [vmem:[%s189 + $0x8] sm:$0xff]
        %v223 = vld [vmem:[%s189 + $0x10] sm:$0xff]
        %v224 = vld [vmem:[%s189 + $0x18] sm:$0xff]
        %v225 = vadd.f32 %v221, %v222
        %v226 = vadd.f32 %v225, %v223
        %v227 = vadd.f32 %v226, %v224
        %228 = vadd.xlane.f32.xlu0 %v227
        %v229 = vpop.xlane.xlu0 %228
        %v230 = vmul.f32 %v229, 0.001953125
        %v231 = vsub.f32 %v221, %v230
        %v232 = vsub.f32 %v222, %v230
        %v233 = vsub.f32 %v223, %v230
        %v234 = vsub.f32 %v224, %v230
        %v235 = vmul.f32 %v231, %v231
        %v236 = vmul.f32 %v232, %v232
        %v237 = vmul.f32 %v233, %v233
        %v238 = vmul.f32 %v234, %v234
        %v239 = vadd.f32 %v235, %v236
        %v240 = vadd.f32 %v239, %v237
        %v241 = vadd.f32 %v240, %v238
        %242 = vadd.xlane.f32.xlu0 %v241
        %v243 = vpop.xlane.xlu0 %242
        %v244 = vmul.f32 %v243, 0.001953125
        %v245 = vadd.f32 %v244, 1e-05
        %v246 = vrsqrt.pop %v245
        %v247 = vld [vmem:[%s197] sm:$0xff]
        %v248 = vld [vmem:[%s197 + $0x8] sm:$0xff]
        %v249 = vmul.f32 %v246, %v247
        %v250 = vmul.f32 %v246, %v248
        %v251 = vmul.f32 %v230, %v249
        %v252 = vmul.f32 %v230, %v250
        %255 = vrot.lane.b32.xlu0 %v251, 1
        %v256 = vpop.permute.xlu0 %255
        %257 = vrot.lane.b32.xlu0 %v252, 1
        %v258 = vpop.permute.xlu0 %257
        %v261 = vsub.f32 %v247, %v256
        %v262 = vsub.f32 %v248, %v258
        %264 = vset.pattern.permute.xlu0 0
        %265 = vperm.xlu0 %264, %v249
        %v266 = vpop.permute.xlu0 %265
        %269 = vset.pattern.permute.xlu0 0
        %270 = vperm.xlu0 %269, %v250
        %v271 = vpop.permute.xlu0 %270
        %v273 = vmul.f32 %v221, %v266
        %v274 = vmul.f32 %v222, %v266
        %v275 = vmul.f32 %v223, %v271
        %v276 = vmul.f32 %v224, %v271
        %278 = vset.pattern.permute.xlu0 1
        %279 = vperm.xlu0 %278, %v261
        %v280 = vpop.permute.xlu0 %279
        %283 = vset.pattern.permute.xlu0 1
        %284 = vperm.xlu0 %283, %v262
        %v285 = vpop.permute.xlu0 %284
        %v287 = vadd.f32 %v273, %v280
        %v288 = vadd.f32 %v274, %v280
        %v289 = vadd.f32 %v275, %v285
        %v290 = vadd.f32 %v276, %v285
        %291 = vst [vmem:[%s220] sm:$0xff] %v287
        %292 = vst [vmem:[%s220 + $0x8] sm:$0xff] %v288
        %293 = vst [vmem:[%s220 + $0x10] sm:$0xff] %v289
        %294 = vst [vmem:[%s220 + $0x18] sm:$0xff] %v290
        %s295 = sand.u32 %s79, 1
        %s296 = scalar_lea.sflag [#allocation4], %s295
        %s297 = sand.u32 %s79, 1
        %s298 = smul.addr %s297, 32
        %s299 = scalar_lea.vmem [#allocation6], %s298
        // Predicated region
        $region71: #{tpu_custom_call.1} parent=61 // pred_check
          %p300 = pneg %p89
        $region72: #{tpu_custom_call.1} parent=61 // pred_check_branch
          %302 = sbr.rel (%p300) target = $region74
        $region73: #{tpu_custom_call.1} parent=61 // pred_region
          %s304 = ssub.s32 512, 512
          %305 = vsyncadd %s296, %s304
          %s306 = smul.addr %s19, 2
          %s307 = smul.addr %s306, 128
          %s308 = scalar_lea.hbm %s2, %s307
          %s309 = sshll.u32 %s299, 4
          %s310 = int_to_ptr.vmem [resolvable:$true] %s309
          %315 = dma.vmem_to_hbm [thread:$0]  %s310, 512, %s308, %s296, 256, 512, 16
        $region74: #{tpu_custom_call.1} parent=61 // pred_fallthru
          _
      $region62: #{tpu_custom_call.1} parent=5 // pred_fallthru
        _
      %p316 = scmp.le.s32.totalorder 2, %s14
      // Predicated region
      $region75: #{tpu_custom_call.1} parent=5 // pred_check
        %p317 = pneg %p316
      $region76: #{tpu_custom_call.1} parent=5 // pred_check_branch
        %319 = sbr.rel (%p317) target = $region78
      $region77: #{tpu_custom_call.1} parent=5 // pred_region
        %s320 = ssub.s32 %s14, 2
        // Predicated region
        $region79: #{tpu_custom_call.1} parent=77 // pred_check
          %p321 = pneg %p95
        $region80: #{tpu_custom_call.1} parent=77 // pred_check_branch
          %323 = sbr.rel (%p321) target = $region82
        $region81: #{tpu_custom_call.1} parent=77 // pred_region
          %s324 = sand.u32 %s80, 1
          %s325 = scalar_lea.sflag [#allocation4], %s324
          %s326 = sand.u32 %s80, 1
          %s327 = smul.addr %s326, 32
          %s328 = scalar_lea.vmem [#allocation6], %s327
          %329 = dma.done %s325, 512
        $region82: #{tpu_custom_call.1} parent=77 // pred_fallthru
          _
      $region78: #{tpu_custom_call.1} parent=5 // pred_fallthru
        _
    $region6: #{tpu_custom_call.1} parent=1 // loop_footer
      %s18 = sadd.s32 1, %s14
    $region7: #{tpu_custom_call.1} parent=1 // loop_footer_branch
      %13 = sbr.rel target = $region3
    $region8: #{tpu_custom_call.1} parent=1 // loop_exit
      _
    %330 = vsyncpa [#allocation3], 1
    %s331 = scalar_lea.sflag [#allocation3], 1
    %332 = vsyncpa %s331, 1
    %333 = vsyncpa [#allocation4], 1
    %s334 = scalar_lea.sflag [#allocation4], 1
    %335 = vsyncpa %s334, 1

</llo_original>
